<compile_context>
chip_gen: v7x
topology: tpu7x:2x2x1
jax: 0.10.0
libtpu: 0.0.40
codegen_flags: <defaults>
</compile_context>

<pallas_src>
import jax
import jax.numpy as jnp
from jax import lax
from jax.experimental import pallas as pl
from jax.experimental.pallas import tpu as pltpu


def _make_kernel(hidden_dim, obs_dim, batch, seq_len, unroll):
    H = hidden_dim
    B = batch  # already padded to a multiple of 8 by the wrapper

    def sigmoid(x):
        # exp on the EUP + approximate reciprocal (vrcp) on the EUP:
        # keeps the divide off the VALU / out of the serial chain.
        return pl.reciprocal(1.0 + jnp.exp(-x), approx=True)

    def lstm_cell(gates, c_prev):
        # PyTorch gate order: i, f, g, o. Full-width activations (one EUP pass
        # each over the (B, 4H) vreg), then slice.
        sg = sigmoid(gates)
        th = jnp.tanh(gates)
        i_g = sg[:, 0 * H:1 * H]
        f_g = sg[:, 1 * H:2 * H]
        g_g = th[:, 2 * H:3 * H]
        o_g = sg[:, 3 * H:4 * H]
        c_new = f_g * c_prev + i_g * g_g
        h_new = o_g * jnp.tanh(c_new)
        return h_new, c_new

    def kernel(z_ref, wz_ref, bz_ref, wrec_ref, brec_ref,
               wout_ref, bout_ref, out_ref, hall_ref):
        # ---- fused latent projection: [gates0 | c0] = z @ [W0 | Wc] + [b0 | bc] ----
        # Column order chosen so both slices are lane-aligned (gates0 = lanes
        # 0..4H-1 exactly one vreg at 4H=128; c0 starts at a vreg boundary).
        zp = (jnp.dot(z_ref[...], wz_ref[...],
                      preferred_element_type=jnp.float32) + bz_ref[...])
        gates0 = zp[:, 0:4 * H]
        c = zp[:, 4 * H:5 * H]

        # ---- step 0 (x_0 == 0): gates already computed from z directly ----
        h, c = lstm_cell(gates0, c)
        hall_ref[0:B, :] = h

        # Hoist the bias broadcast out of the unrolled loop.
        b_rec = jnp.broadcast_to(brec_ref[...], (B, 4 * H))

        # ---- steps 1..seq_len-1: feedback folded into W_rec / b_rec ----
        def body(t, carry):
            h, c = carry
            gates = jnp.dot(h, wrec_ref[...],
                            preferred_element_type=jnp.float32) + b_rec
            h, c = lstm_cell(gates, c)
            hall_ref[pl.ds(t * B, B), :] = h
            return (h, c)

        lax.fori_loop(1, seq_len, body, (h, c), unroll=unroll)

        # ---- single hidden->output projection + one consolidated store ----
        out_ref[...] = (jnp.dot(hall_ref[...], wout_ref[...],
                                preferred_element_type=jnp.float32)
                        + bout_ref[...])

    return kernel


def lstm_decoder_forward(z, params, seq_len):
    """Pallas implementation of LSTMDecoder.forward. Returns [B, seq_len, obs_dim]."""
    assert seq_len >= 1, "kernel requires seq_len >= 1"
    B, latent_dim = z.shape
    hidden_dim = params["wh"].shape[1]
    obs_dim = params["wout"].shape[1]
    H = hidden_dim

    # Pad batch to the f32 sublane width (8); padded rows are computed (cheap,
    # same vregs) and sliced off after the call.
    SUB = 8
    Bp = max(SUB, ((B + SUB - 1) // SUB) * SUB)
    z_p = jnp.zeros((Bp, latent_dim), jnp.float32).at[:B].set(z)

    # Wrapper-side weight folds (exact up to fp reassociation):
    #   t >= 1:  W_rec = W_hh + W_out @ W_ih ,  b_rec = b + b_out @ W_ih
    #   t == 0:  gates0 = z @ (W_h @ W_hh) + (b_h @ W_hh + b)   (since x_0 == 0)
    #            c0     = z @ W_c + b_c
    # The two z-projections are concatenated into one matmul z @ [W0 | Wc].
    w_rec = params["whh"] + params["wout"] @ params["wih"]
    b_rec = params["b"] + params["bout"] @ params["wih"]
    w0 = params["wh"] @ params["whh"]                       # (latent, 4H)
    b0 = params["bh"] @ params["whh"] + params["b"]         # (1, 4H)
    w_z = jnp.concatenate([w0, params["wc"]], axis=1)       # (latent, 5H)
    b_z = jnp.concatenate([b0, params["bc"]], axis=1)       # (1, 5H)

    # Full unroll only for short sequences; partial unroll keeps LLO scheduler
    # visibility without blowing up instruction footprint / vreg live ranges.
    unroll = True if seq_len <= 32 else 8

    kernel = _make_kernel(H, obs_dim, Bp, seq_len, unroll)

    # NOTE (v7x): hall scratch is seq_len*Bp*H*4 bytes; at production shapes
    # re-check against the 64 MiB VMEM budget and tile the final projection.
    vmem_spec = lambda: pl.BlockSpec(memory_space=pltpu.MemorySpace.VMEM)
    out2d = pl.pallas_call(
        kernel,
        out_shape=jax.ShapeDtypeStruct((seq_len * Bp, obs_dim), jnp.float32),
        in_specs=[vmem_spec() for _ in range(7)],
        out_specs=vmem_spec(),
        scratch_shapes=[pltpu.VMEM((seq_len * Bp, H), jnp.float32)],
    )(z_p, w_z, b_z, w_rec, b_rec, params["wout"], params["bout"])

    # glue: [seq_len*Bp, obs] -> [Bp, seq_len, obs] -> drop batch padding.
    out = jnp.transpose(out2d.reshape(seq_len, Bp, obs_dim), (1, 0, 2))
    return out[:B]


def lstm_decoder_reference(z, params, seq_len):
    """Pure-JAX reference matching the PyTorch forward semantics (unfolded)."""
    B = z.shape[0]
    H = params["wh"].shape[1]
    obs_dim = params["wout"].shape[1]
    h = z @ params["wh"] + params["bh"]
    c = z @ params["wc"] + params["bc"]
    x = jnp.zeros((B, obs_dim), jnp.float32)
    outs = []
    for _ in range(seq_len):
        gates = x @ params["wih"] + h @ params["whh"] + params["b"]
        i_g = jax.nn.sigmoid(gates[:, 0 * H:1 * H])
        f_g = jax.nn.sigmoid(gates[:, 1 * H:2 * H])
        g_g = jnp.tanh(gates[:, 2 * H:3 * H])
        o_g = jax.nn.sigmoid(gates[:, 3 * H:4 * H])
        c = f_g * c + i_g * g_g
        h = o_g * jnp.tanh(c)
        y = h @ params["wout"] + params["bout"]
        outs.append(y)
        x = y  # .detach() is a forward no-op
    return jnp.stack(outs, axis=1)


def init_params(key, latent_dim, hidden_dim, obs_dim):
    """Deterministic synthetic parameters (module __init__ gives the shapes)."""
    ks = jax.random.split(key, 10)
    u = lambda k, shape, scale: jax.random.uniform(
        k, shape, jnp.float32, minval=-scale, maxval=scale)
    s_lin = 1.0 / jnp.sqrt(latent_dim)
    s_lstm = 1.0 / jnp.sqrt(hidden_dim)
    s_out = 1.0 / jnp.sqrt(hidden_dim)
    return {
        # nn.Linear(latent_dim, hidden_dim) — stored transposed as [in, out]
        "wh": u(ks[0], (latent_dim, hidden_dim), s_lin),
        "bh": u(ks[1], (1, hidden_dim), s_lin),
        "wc": u(ks[2], (latent_dim, hidden_dim), s_lin),
        "bc": u(ks[3], (1, hidden_dim), s_lin),
        # nn.LSTM(obs_dim, hidden_dim) — gate order i,f,g,o, stored transposed
        "wih": u(ks[4], (obs_dim, 4 * hidden_dim), s_lstm),
        "whh": u(ks[5], (hidden_dim, 4 * hidden_dim), s_lstm),
        "b": (u(ks[6], (1, 4 * hidden_dim), s_lstm)
              + u(ks[7], (1, 4 * hidden_dim), s_lstm)),  # b_ih + b_hh
        # nn.Linear(hidden_dim, obs_dim)
        "wout": u(ks[8], (hidden_dim, obs_dim), s_out),
        "bout": u(ks[9], (1, obs_dim), s_out),
    }


if __name__ == "__main__":
    batch = 2
    latent_dim = 8
    hidden_dim = 32
    obs_dim = 16
    seq_len = 8

    key = jax.random.PRNGKey(0)
    k_z, k_p = jax.random.split(key)
    z = jax.random.normal(k_z, (batch, latent_dim), jnp.float32)
    params = init_params(k_p, latent_dim, hidden_dim, obs_dim)

    out = lstm_decoder_forward(z, params, seq_len)
    out = jax.block_until_ready(out)

    ref = lstm_decoder_reference(z, params, seq_len)
    assert out.shape == (batch, seq_len, obs_dim)
    # Weight folds reassociate fp32 matmuls and sigmoid uses the EUP approximate
    # reciprocal, so bitwise parity with the unfolded reference is intentionally
    # given up; 2e-3 is comfortably above the observed deviation.
    assert jnp.allclose(out, ref, atol=2e-3, rtol=2e-3), "mismatch vs reference"

    print("KERNEL_OK")
</pallas_src>

<mosaic_0001>
module attributes {stable_mosaic.version = 11 : i64} {
  func.func @kernel(%arg0: memref<8x8xf32, #tpu.memory_space<vmem>>, %arg1: memref<8x160xf32, #tpu.memory_space<vmem>>, %arg2: memref<1x160xf32, #tpu.memory_space<vmem>>, %arg3: memref<32x128xf32, #tpu.memory_space<vmem>>, %arg4: memref<1x128xf32, #tpu.memory_space<vmem>>, %arg5: memref<32x16xf32, #tpu.memory_space<vmem>>, %arg6: memref<1x16xf32, #tpu.memory_space<vmem>>, %arg7: memref<64x16xf32, #tpu.memory_space<vmem>>, %arg8: memref<64x32xf32, #tpu.memory_space<vmem>>) attributes {dimension_semantics = [], scalar_prefetch = 0 : i64, scratch_operands = 1 : i64, tpu.core_type = #tpu.core_type<tc>} {
    %c0 = arith.constant 0 : index
    %c0_0 = arith.constant 0 : index
    %0 = vector.load %arg0[%c0, %c0_0] : memref<8x8xf32, #tpu.memory_space<vmem>>, vector<8x8xf32>
    %c0_1 = arith.constant 0 : index
    %c0_2 = arith.constant 0 : index
    %1 = vector.load %arg1[%c0_1, %c0_2] : memref<8x160xf32, #tpu.memory_space<vmem>>, vector<8x160xf32>
    %cst = arith.constant dense<0.000000e+00> : vector<8x160xf32>
    %2 = tpu.matmul %0, %1, %cst {dimension_numbers = #tpu.dot_dimension_numbers<[1], [0], [0], [1], [0, 0, 1, 1], [], []>} : vector<8x8xf32>, vector<8x160xf32>, vector<8x160xf32> -> vector<8x160xf32>
    %c0_3 = arith.constant 0 : index
    %c0_4 = arith.constant 0 : index
    %3 = vector.load %arg2[%c0_3, %c0_4] : memref<1x160xf32, #tpu.memory_space<vmem>>, vector<1x160xf32>
    %4 = vector.broadcast %3 : vector<1x160xf32> to vector<8x160xf32>
    %5 = arith.addf %2, %4 : vector<8x160xf32>
    %6 = vector.extract_strided_slice %5 {offsets = [0, 0], sizes = [8, 128], strides = [1, 1]} : vector<8x160xf32> to vector<8x128xf32>
    %7 = vector.extract_strided_slice %5 {offsets = [0, 128], sizes = [8, 32], strides = [1, 1]} : vector<8x160xf32> to vector<8x32xf32>
    %cst_5 = arith.constant 0.000000e+00 : f32
    %8 = vector.broadcast %cst_5 : f32 to vector<8x128xf32>
    %9 = arith.subf %8, %6 : vector<8x128xf32>
    %10 = math.exp %9 : vector<8x128xf32>
    %cst_6 = arith.constant 1.000000e+00 : f32
    %11 = vector.broadcast %cst_6 : f32 to vector<8x128xf32>
    %12 = arith.addf %11, %10 : vector<8x128xf32>
    %13 = tpu.reciprocal %12 {approx = true} : vector<8x128xf32> -> vector<8x128xf32>
    %14 = math.tanh %6 : vector<8x128xf32>
    %15 = vector.extract_strided_slice %13 {offsets = [0, 0], sizes = [8, 32], strides = [1, 1]} : vector<8x128xf32> to vector<8x32xf32>
    %16 = vector.extract_strided_slice %13 {offsets = [0, 32], sizes = [8, 32], strides = [1, 1]} : vector<8x128xf32> to vector<8x32xf32>
    %17 = vector.extract_strided_slice %14 {offsets = [0, 64], sizes = [8, 32], strides = [1, 1]} : vector<8x128xf32> to vector<8x32xf32>
    %18 = vector.extract_strided_slice %13 {offsets = [0, 96], sizes = [8, 32], strides = [1, 1]} : vector<8x128xf32> to vector<8x32xf32>
    %19 = arith.mulf %16, %7 : vector<8x32xf32>
    %20 = arith.mulf %15, %17 : vector<8x32xf32>
    %21 = arith.addf %19, %20 : vector<8x32xf32>
    %22 = math.tanh %21 : vector<8x32xf32>
    %23 = arith.mulf %18, %22 : vector<8x32xf32>
    %c0_7 = arith.constant 0 : index
    %c0_8 = arith.constant 0 : index
    %24 = vector.load %arg8[%c0_7, %c0_8] : memref<64x32xf32, #tpu.memory_space<vmem>>, vector<8x32xf32>
    tpu.vector_store %arg8[%c0_7, %c0_8], %23 {strides = array<i32>} : memref<64x32xf32, #tpu.memory_space<vmem>>, vector<8x32xf32>,
    %c0_9 = arith.constant 0 : index
    %c0_10 = arith.constant 0 : index
    %25 = vector.load %arg4[%c0_9, %c0_10] : memref<1x128xf32, #tpu.memory_space<vmem>>, vector<1x128xf32>
    %26 = vector.shape_cast %25 : vector<1x128xf32> to vector<1x128xf32>
    %27 = vector.broadcast %26 : vector<1x128xf32> to vector<8x128xf32>
    %c1_i32 = arith.constant 1 : i32
    %c0_11 = arith.constant 0 : index
    %c0_12 = arith.constant 0 : index
    %28 = vector.load %arg3[%c0_11, %c0_12] : memref<32x128xf32, #tpu.memory_space<vmem>>, vector<32x128xf32>
    %cst_13 = arith.constant dense<0.000000e+00> : vector<8x128xf32>
    %29 = tpu.matmul %23, %28, %cst_13 {dimension_numbers = #tpu.dot_dimension_numbers<[1], [0], [0], [1], [0, 0, 1, 1], [], []>} : vector<8x32xf32>, vector<32x128xf32>, vector<8x128xf32> -> vector<8x128xf32>
    %30 = arith.addf %29, %27 : vector<8x128xf32>
    %cst_14 = arith.constant 0.000000e+00 : f32
    %31 = vector.broadcast %cst_14 : f32 to vector<8x128xf32>
    %32 = arith.subf %31, %30 : vector<8x128xf32>
    %33 = math.exp %32 : vector<8x128xf32>
    %cst_15 = arith.constant 1.000000e+00 : f32
    %34 = vector.broadcast %cst_15 : f32 to vector<8x128xf32>
    %35 = arith.addf %34, %33 : vector<8x128xf32>
    %36 = tpu.reciprocal %35 {approx = true} : vector<8x128xf32> -> vector<8x128xf32>
    %37 = math.tanh %30 : vector<8x128xf32>
    %38 = vector.extract_strided_slice %36 {offsets = [0, 0], sizes = [8, 32], strides = [1, 1]} : vector<8x128xf32> to vector<8x32xf32>
    %39 = vector.extract_strided_slice %36 {offsets = [0, 32], sizes = [8, 32], strides = [1, 1]} : vector<8x128xf32> to vector<8x32xf32>
    %40 = vector.extract_strided_slice %37 {offsets = [0, 64], sizes = [8, 32], strides = [1, 1]} : vector<8x128xf32> to vector<8x32xf32>
    %41 = vector.extract_strided_slice %36 {offsets = [0, 96], sizes = [8, 32], strides = [1, 1]} : vector<8x128xf32> to vector<8x32xf32>
    %42 = arith.mulf %39, %21 : vector<8x32xf32>
    %43 = arith.mulf %38, %40 : vector<8x32xf32>
    %44 = arith.addf %42, %43 : vector<8x32xf32>
    %45 = math.tanh %44 : vector<8x32xf32>
    %46 = arith.mulf %41, %45 : vector<8x32xf32>
    %c8_i32 = arith.constant 8 : i32
    %47 = arith.muli %c1_i32, %c8_i32 : i32
    %48 = arith.index_cast %47 : i32 to index
    %c0_16 = arith.constant 0 : index
    %49 = vector.load %arg8[%48, %c0_16] : memref<64x32xf32, #tpu.memory_space<vmem>>, vector<8x32xf32>
    tpu.vector_store %arg8[%48, %c0_16], %46 {strides = array<i32>} : memref<64x32xf32, #tpu.memory_space<vmem>>, vector<8x32xf32>,
    %c2_i32 = arith.constant 2 : i32
    %c0_17 = arith.constant 0 : index
    %c0_18 = arith.constant 0 : index
    %50 = vector.load %arg3[%c0_17, %c0_18] : memref<32x128xf32, #tpu.memory_space<vmem>>, vector<32x128xf32>
    %cst_19 = arith.constant dense<0.000000e+00> : vector<8x128xf32>
    %51 = tpu.matmul %46, %50, %cst_19 {dimension_numbers = #tpu.dot_dimension_numbers<[1], [0], [0], [1], [0, 0, 1, 1], [], []>} : vector<8x32xf32>, vector<32x128xf32>, vector<8x128xf32> -> vector<8x128xf32>
    %52 = arith.addf %51, %27 : vector<8x128xf32>
    %cst_20 = arith.constant 0.000000e+00 : f32
    %53 = vector.broadcast %cst_20 : f32 to vector<8x128xf32>
    %54 = arith.subf %53, %52 : vector<8x128xf32>
    %55 = math.exp %54 : vector<8x128xf32>
    %cst_21 = arith.constant 1.000000e+00 : f32
    %56 = vector.broadcast %cst_21 : f32 to vector<8x128xf32>
    %57 = arith.addf %56, %55 : vector<8x128xf32>
    %58 = tpu.reciprocal %57 {approx = true} : vector<8x128xf32> -> vector<8x128xf32>
    %59 = math.tanh %52 : vector<8x128xf32>
    %60 = vector.extract_strided_slice %58 {offsets = [0, 0], sizes = [8, 32], strides = [1, 1]} : vector<8x128xf32> to vector<8x32xf32>
    %61 = vector.extract_strided_slice %58 {offsets = [0, 32], sizes = [8, 32], strides = [1, 1]} : vector<8x128xf32> to vector<8x32xf32>
    %62 = vector.extract_strided_slice %59 {offsets = [0, 64], sizes = [8, 32], strides = [1, 1]} : vector<8x128xf32> to vector<8x32xf32>
    %63 = vector.extract_strided_slice %58 {offsets = [0, 96], sizes = [8, 32], strides = [1, 1]} : vector<8x128xf32> to vector<8x32xf32>
    %64 = arith.mulf %61, %44 : vector<8x32xf32>
    %65 = arith.mulf %60, %62 : vector<8x32xf32>
    %66 = arith.addf %64, %65 : vector<8x32xf32>
    %67 = math.tanh %66 : vector<8x32xf32>
    %68 = arith.mulf %63, %67 : vector<8x32xf32>
    %c8_i32_22 = arith.constant 8 : i32
    %69 = arith.muli %c2_i32, %c8_i32_22 : i32
    %70 = arith.index_cast %69 : i32 to index
    %c0_23 = arith.constant 0 : index
    %71 = vector.load %arg8[%70, %c0_23] : memref<64x32xf32, #tpu.memory_space<vmem>>, vector<8x32xf32>
    tpu.vector_store %arg8[%70, %c0_23], %68 {strides = array<i32>} : memref<64x32xf32, #tpu.memory_space<vmem>>, vector<8x32xf32>,
    %c3_i32 = arith.constant 3 : i32
    %c0_24 = arith.constant 0 : index
    %c0_25 = arith.constant 0 : index
    %72 = vector.load %arg3[%c0_24, %c0_25] : memref<32x128xf32, #tpu.memory_space<vmem>>, vector<32x128xf32>
    %cst_26 = arith.constant dense<0.000000e+00> : vector<8x128xf32>
    %73 = tpu.matmul %68, %72, %cst_26 {dimension_numbers = #tpu.dot_dimension_numbers<[1], [0], [0], [1], [0, 0, 1, 1], [], []>} : vector<8x32xf32>, vector<32x128xf32>, vector<8x128xf32> -> vector<8x128xf32>
    %74 = arith.addf %73, %27 : vector<8x128xf32>
    %cst_27 = arith.constant 0.000000e+00 : f32
    %75 = vector.broadcast %cst_27 : f32 to vector<8x128xf32>
    %76 = arith.subf %75, %74 : vector<8x128xf32>
    %77 = math.exp %76 : vector<8x128xf32>
    %cst_28 = arith.constant 1.000000e+00 : f32
    %78 = vector.broadcast %cst_28 : f32 to vector<8x128xf32>
    %79 = arith.addf %78, %77 : vector<8x128xf32>
    %80 = tpu.reciprocal %79 {approx = true} : vector<8x128xf32> -> vector<8x128xf32>
    %81 = math.tanh %74 : vector<8x128xf32>
    %82 = vector.extract_strided_slice %80 {offsets = [0, 0], sizes = [8, 32], strides = [1, 1]} : vector<8x128xf32> to vector<8x32xf32>
    %83 = vector.extract_strided_slice %80 {offsets = [0, 32], sizes = [8, 32], strides = [1, 1]} : vector<8x128xf32> to vector<8x32xf32>
    %84 = vector.extract_strided_slice %81 {offsets = [0, 64], sizes = [8, 32], strides = [1, 1]} : vector<8x128xf32> to vector<8x32xf32>
    %85 = vector.extract_strided_slice %80 {offsets = [0, 96], sizes = [8, 32], strides = [1, 1]} : vector<8x128xf32> to vector<8x32xf32>
    %86 = arith.mulf %83, %66 : vector<8x32xf32>
    %87 = arith.mulf %82, %84 : vector<8x32xf32>
    %88 = arith.addf %86, %87 : vector<8x32xf32>
    %89 = math.tanh %88 : vector<8x32xf32>
    %90 = arith.mulf %85, %89 : vector<8x32xf32>
    %c8_i32_29 = arith.constant 8 : i32
    %91 = arith.muli %c3_i32, %c8_i32_29 : i32
    %92 = arith.index_cast %91 : i32 to index
    %c0_30 = arith.constant 0 : index
    %93 = vector.load %arg8[%92, %c0_30] : memref<64x32xf32, #tpu.memory_space<vmem>>, vector<8x32xf32>
    tpu.vector_store %arg8[%92, %c0_30], %90 {strides = array<i32>} : memref<64x32xf32, #tpu.memory_space<vmem>>, vector<8x32xf32>,
    %c4_i32 = arith.constant 4 : i32
    %c0_31 = arith.constant 0 : index
    %c0_32 = arith.constant 0 : index
    %94 = vector.load %arg3[%c0_31, %c0_32] : memref<32x128xf32, #tpu.memory_space<vmem>>, vector<32x128xf32>
    %cst_33 = arith.constant dense<0.000000e+00> : vector<8x128xf32>
    %95 = tpu.matmul %90, %94, %cst_33 {dimension_numbers = #tpu.dot_dimension_numbers<[1], [0], [0], [1], [0, 0, 1, 1], [], []>} : vector<8x32xf32>, vector<32x128xf32>, vector<8x128xf32> -> vector<8x128xf32>
    %96 = arith.addf %95, %27 : vector<8x128xf32>
    %cst_34 = arith.constant 0.000000e+00 : f32
    %97 = vector.broadcast %cst_34 : f32 to vector<8x128xf32>
    %98 = arith.subf %97, %96 : vector<8x128xf32>
    %99 = math.exp %98 : vector<8x128xf32>
    %cst_35 = arith.constant 1.000000e+00 : f32
    %100 = vector.broadcast %cst_35 : f32 to vector<8x128xf32>
    %101 = arith.addf %100, %99 : vector<8x128xf32>
    %102 = tpu.reciprocal %101 {approx = true} : vector<8x128xf32> -> vector<8x128xf32>
    %103 = math.tanh %96 : vector<8x128xf32>
    %104 = vector.extract_strided_slice %102 {offsets = [0, 0], sizes = [8, 32], strides = [1, 1]} : vector<8x128xf32> to vector<8x32xf32>
    %105 = vector.extract_strided_slice %102 {offsets = [0, 32], sizes = [8, 32], strides = [1, 1]} : vector<8x128xf32> to vector<8x32xf32>
    %106 = vector.extract_strided_slice %103 {offsets = [0, 64], sizes = [8, 32], strides = [1, 1]} : vector<8x128xf32> to vector<8x32xf32>
    %107 = vector.extract_strided_slice %102 {offsets = [0, 96], sizes = [8, 32], strides = [1, 1]} : vector<8x128xf32> to vector<8x32xf32>
    %108 = arith.mulf %105, %88 : vector<8x32xf32>
    %109 = arith.mulf %104, %106 : vector<8x32xf32>
    %110 = arith.addf %108, %109 : vector<8x32xf32>
    %111 = math.tanh %110 : vector<8x32xf32>
    %112 = arith.mulf %107, %111 : vector<8x32xf32>
    %c8_i32_36 = arith.constant 8 : i32
    %113 = arith.muli %c4_i32, %c8_i32_36 : i32
    %114 = arith.index_cast %113 : i32 to index
    %c0_37 = arith.constant 0 : index
    %115 = vector.load %arg8[%114, %c0_37] : memref<64x32xf32, #tpu.memory_space<vmem>>, vector<8x32xf32>
    tpu.vector_store %arg8[%114, %c0_37], %112 {strides = array<i32>} : memref<64x32xf32, #tpu.memory_space<vmem>>, vector<8x32xf32>,
    %c5_i32 = arith.constant 5 : i32
    %c0_38 = arith.constant 0 : index
    %c0_39 = arith.constant 0 : index
    %116 = vector.load %arg3[%c0_38, %c0_39] : memref<32x128xf32, #tpu.memory_space<vmem>>, vector<32x128xf32>
    %cst_40 = arith.constant dense<0.000000e+00> : vector<8x128xf32>
    %117 = tpu.matmul %112, %116, %cst_40 {dimension_numbers = #tpu.dot_dimension_numbers<[1], [0], [0], [1], [0, 0, 1, 1], [], []>} : vector<8x32xf32>, vector<32x128xf32>, vector<8x128xf32> -> vector<8x128xf32>
    %118 = arith.addf %117, %27 : vector<8x128xf32>
    %cst_41 = arith.constant 0.000000e+00 : f32
    %119 = vector.broadcast %cst_41 : f32 to vector<8x128xf32>
    %120 = arith.subf %119, %118 : vector<8x128xf32>
    %121 = math.exp %120 : vector<8x128xf32>
    %cst_42 = arith.constant 1.000000e+00 : f32
    %122 = vector.broadcast %cst_42 : f32 to vector<8x128xf32>
    %123 = arith.addf %122, %121 : vector<8x128xf32>
    %124 = tpu.reciprocal %123 {approx = true} : vector<8x128xf32> -> vector<8x128xf32>
    %125 = math.tanh %118 : vector<8x128xf32>
    %126 = vector.extract_strided_slice %124 {offsets = [0, 0], sizes = [8, 32], strides = [1, 1]} : vector<8x128xf32> to vector<8x32xf32>
    %127 = vector.extract_strided_slice %124 {offsets = [0, 32], sizes = [8, 32], strides = [1, 1]} : vector<8x128xf32> to vector<8x32xf32>
    %128 = vector.extract_strided_slice %125 {offsets = [0, 64], sizes = [8, 32], strides = [1, 1]} : vector<8x128xf32> to vector<8x32xf32>
    %129 = vector.extract_strided_slice %124 {offsets = [0, 96], sizes = [8, 32], strides = [1, 1]} : vector<8x128xf32> to vector<8x32xf32>
    %130 = arith.mulf %127, %110 : vector<8x32xf32>
    %131 = arith.mulf %126, %128 : vector<8x32xf32>
    %132 = arith.addf %130, %131 : vector<8x32xf32>
    %133 = math.tanh %132 : vector<8x32xf32>
    %134 = arith.mulf %129, %133 : vector<8x32xf32>
    %c8_i32_43 = arith.constant 8 : i32
    %135 = arith.muli %c5_i32, %c8_i32_43 : i32
    %136 = arith.index_cast %135 : i32 to index
    %c0_44 = arith.constant 0 : index
    %137 = vector.load %arg8[%136, %c0_44] : memref<64x32xf32, #tpu.memory_space<vmem>>, vector<8x32xf32>
    tpu.vector_store %arg8[%136, %c0_44], %134 {strides = array<i32>} : memref<64x32xf32, #tpu.memory_space<vmem>>, vector<8x32xf32>,
    %c6_i32 = arith.constant 6 : i32
    %c0_45 = arith.constant 0 : index
    %c0_46 = arith.constant 0 : index
    %138 = vector.load %arg3[%c0_45, %c0_46] : memref<32x128xf32, #tpu.memory_space<vmem>>, vector<32x128xf32>
    %cst_47 = arith.constant dense<0.000000e+00> : vector<8x128xf32>
    %139 = tpu.matmul %134, %138, %cst_47 {dimension_numbers = #tpu.dot_dimension_numbers<[1], [0], [0], [1], [0, 0, 1, 1], [], []>} : vector<8x32xf32>, vector<32x128xf32>, vector<8x128xf32> -> vector<8x128xf32>
    %140 = arith.addf %139, %27 : vector<8x128xf32>
    %cst_48 = arith.constant 0.000000e+00 : f32
    %141 = vector.broadcast %cst_48 : f32 to vector<8x128xf32>
    %142 = arith.subf %141, %140 : vector<8x128xf32>
    %143 = math.exp %142 : vector<8x128xf32>
    %cst_49 = arith.constant 1.000000e+00 : f32
    %144 = vector.broadcast %cst_49 : f32 to vector<8x128xf32>
    %145 = arith.addf %144, %143 : vector<8x128xf32>
    %146 = tpu.reciprocal %145 {approx = true} : vector<8x128xf32> -> vector<8x128xf32>
    %147 = math.tanh %140 : vector<8x128xf32>
    %148 = vector.extract_strided_slice %146 {offsets = [0, 0], sizes = [8, 32], strides = [1, 1]} : vector<8x128xf32> to vector<8x32xf32>
    %149 = vector.extract_strided_slice %146 {offsets = [0, 32], sizes = [8, 32], strides = [1, 1]} : vector<8x128xf32> to vector<8x32xf32>
    %150 = vector.extract_strided_slice %147 {offsets = [0, 64], sizes = [8, 32], strides = [1, 1]} : vector<8x128xf32> to vector<8x32xf32>
    %151 = vector.extract_strided_slice %146 {offsets = [0, 96], sizes = [8, 32], strides = [1, 1]} : vector<8x128xf32> to vector<8x32xf32>
    %152 = arith.mulf %149, %132 : vector<8x32xf32>
    %153 = arith.mulf %148, %150 : vector<8x32xf32>
    %154 = arith.addf %152, %153 : vector<8x32xf32>
    %155 = math.tanh %154 : vector<8x32xf32>
    %156 = arith.mulf %151, %155 : vector<8x32xf32>
    %c8_i32_50 = arith.constant 8 : i32
    %157 = arith.muli %c6_i32, %c8_i32_50 : i32
    %158 = arith.index_cast %157 : i32 to index
    %c0_51 = arith.constant 0 : index
    %159 = vector.load %arg8[%158, %c0_51] : memref<64x32xf32, #tpu.memory_space<vmem>>, vector<8x32xf32>
    tpu.vector_store %arg8[%158, %c0_51], %156 {strides = array<i32>} : memref<64x32xf32, #tpu.memory_space<vmem>>, vector<8x32xf32>,
    %c7_i32 = arith.constant 7 : i32
    %c0_52 = arith.constant 0 : index
    %c0_53 = arith.constant 0 : index
    %160 = vector.load %arg3[%c0_52, %c0_53] : memref<32x128xf32, #tpu.memory_space<vmem>>, vector<32x128xf32>
    %cst_54 = arith.constant dense<0.000000e+00> : vector<8x128xf32>
    %161 = tpu.matmul %156, %160, %cst_54 {dimension_numbers = #tpu.dot_dimension_numbers<[1], [0], [0], [1], [0, 0, 1, 1], [], []>} : vector<8x32xf32>, vector<32x128xf32>, vector<8x128xf32> -> vector<8x128xf32>
    %162 = arith.addf %161, %27 : vector<8x128xf32>
    %cst_55 = arith.constant 0.000000e+00 : f32
    %163 = vector.broadcast %cst_55 : f32 to vector<8x128xf32>
    %164 = arith.subf %163, %162 : vector<8x128xf32>
    %165 = math.exp %164 : vector<8x128xf32>
    %cst_56 = arith.constant 1.000000e+00 : f32
    %166 = vector.broadcast %cst_56 : f32 to vector<8x128xf32>
    %167 = arith.addf %166, %165 : vector<8x128xf32>
    %168 = tpu.reciprocal %167 {approx = true} : vector<8x128xf32> -> vector<8x128xf32>
    %169 = math.tanh %162 : vector<8x128xf32>
    %170 = vector.extract_strided_slice %168 {offsets = [0, 0], sizes = [8, 32], strides = [1, 1]} : vector<8x128xf32> to vector<8x32xf32>
    %171 = vector.extract_strided_slice %168 {offsets = [0, 32], sizes = [8, 32], strides = [1, 1]} : vector<8x128xf32> to vector<8x32xf32>
    %172 = vector.extract_strided_slice %169 {offsets = [0, 64], sizes = [8, 32], strides = [1, 1]} : vector<8x128xf32> to vector<8x32xf32>
    %173 = vector.extract_strided_slice %168 {offsets = [0, 96], sizes = [8, 32], strides = [1, 1]} : vector<8x128xf32> to vector<8x32xf32>
    %174 = arith.mulf %171, %154 : vector<8x32xf32>
    %175 = arith.mulf %170, %172 : vector<8x32xf32>
    %176 = arith.addf %174, %175 : vector<8x32xf32>
    %177 = math.tanh %176 : vector<8x32xf32>
    %178 = arith.mulf %173, %177 : vector<8x32xf32>
    %c8_i32_57 = arith.constant 8 : i32
    %179 = arith.muli %c7_i32, %c8_i32_57 : i32
    %180 = arith.index_cast %179 : i32 to index
    %c0_58 = arith.constant 0 : index
    %181 = vector.load %arg8[%180, %c0_58] : memref<64x32xf32, #tpu.memory_space<vmem>>, vector<8x32xf32>
    tpu.vector_store %arg8[%180, %c0_58], %178 {strides = array<i32>} : memref<64x32xf32, #tpu.memory_space<vmem>>, vector<8x32xf32>,
    %c7_i32_59 = arith.constant 7 : i32
    %c0_60 = arith.constant 0 : index
    %c0_61 = arith.constant 0 : index
    %182 = vector.load %arg8[%c0_60, %c0_61] : memref<64x32xf32, #tpu.memory_space<vmem>>, vector<64x32xf32>
    %c0_62 = arith.constant 0 : index
    %c0_63 = arith.constant 0 : index
    %183 = vector.load %arg5[%c0_62, %c0_63] : memref<32x16xf32, #tpu.memory_space<vmem>>, vector<32x16xf32>
    %cst_64 = arith.constant dense<0.000000e+00> : vector<64x16xf32>
    %184 = tpu.matmul %182, %183, %cst_64 {dimension_numbers = #tpu.dot_dimension_numbers<[1], [0], [0], [1], [0, 0, 1, 1], [], []>} : vector<64x32xf32>, vector<32x16xf32>, vector<64x16xf32> -> vector<64x16xf32>
    %c0_65 = arith.constant 0 : index
    %c0_66 = arith.constant 0 : index
    %185 = vector.load %arg6[%c0_65, %c0_66] : memref<1x16xf32, #tpu.memory_space<vmem>>, vector<1x16xf32>
    %186 = vector.broadcast %185 : vector<1x16xf32> to vector<64x16xf32>
    %187 = arith.addf %184, %186 : vector<64x16xf32>
    %c0_67 = arith.constant 0 : index
    %c0_68 = arith.constant 0 : index
    %188 = vector.load %arg7[%c0_67, %c0_68] : memref<64x16xf32, #tpu.memory_space<vmem>>, vector<64x16xf32>
    tpu.vector_store %arg7[%c0_67, %c0_68], %187 {strides = array<i32>} : memref<64x16xf32, #tpu.memory_space<vmem>>, vector<64x16xf32>,
    return
  }
}

</mosaic_0001>

<llo_original>
// kernel: tpu_custom_call.1
$region0: #{tpu_custom_call.1}
  #allocation0 [shape = 'u32[]', space=smem, size = 0x4, offset = 0x4, fixed_abs, tag = 'smem constant byte address 0x4 - core index']
  #allocation1 [shape = 'u32[144,128]{1,0:T(1,128)}', space=vmem, size = 0x12000, scoped, tag = 'internal scratch']
  #allocation2 [shape = 'f32[64,32]{1,0:T(8,128)}', space=vmem, size = 0x8000, scoped, tag = 'scratch operand']
  %s0 = inlined_call_operand.hbm [shape: f32[8,8], index: 0, kind: input, shape index: {}]
  %s1 = inlined_call_operand.vmem [shape: f32[8,160], index: 1, kind: input, shape index: {}]
  %s2 = inlined_call_operand.vmem [shape: f32[1,160], index: 2, kind: input, shape index: {}]
  %s3 = inlined_call_operand.vmem [shape: f32[32,128], index: 3, kind: input, shape index: {}]
  %s4 = inlined_call_operand.hbm [shape: f32[1,128], index: 4, kind: input, shape index: {}]
  %s5 = inlined_call_operand.vmem [shape: f32[32,16], index: 5, kind: input, shape index: {}]
  %s6 = inlined_call_operand.vmem [shape: f32[1,16], index: 6, kind: input, shape index: {}]
  %s7 = inlined_call_operand.vmem [shape: f32[64,16], index: 7, kind: output, shape index: {}]
  %s8 = sld [smem:[#allocation0]]
  $region46: #{tpu_custom_call.1} parent=0
    _
  %s10 = ssub.s32 1, %s8
  %s11 = scalar_select 0, %s10, %s8
  $region1: #{tpu_custom_call.1} parent=0
    #allocation3 [shape = 'u8[4096]{0}', space=vmem, size = 0x1000, scoped, tag = 'input window, operand 0, single buffered']
    #allocation4 [shape = 's32[1]{0}', space=sflag, size = 0x4, scoped, tag = 'scoped memory for tpu_custom_call.1']
    #allocation5 [shape = 'u8[512]{0}', space=vmem, size = 0x400, scoped, tag = 'input window, operand 4, single buffered']
    #allocation6 [shape = 's32[1]{0}', space=sflag, size = 0x4, scoped, tag = 'scoped memory for tpu_custom_call.1']
    %12 = vsyncpa [#allocation4], 0
    %13 = vsyncpa [#allocation6], 0
    // Predicated region
    $region2: #{tpu_custom_call.1} parent=1 // pred_check
      _
    $region3: #{tpu_custom_call.1} parent=1 // pred_check_branch
      %15 = sbr.rel (0) target = $region5
    $region4: #{tpu_custom_call.1} parent=1 // pred_region
      %s17 = ssub.s32 128, 128
      %18 = vsyncadd [#allocation4], %s17
      %s20 = sshll.u32 [#allocation3], 4
      %s21 = int_to_ptr.vmem [resolvable:$true] %s20
      %23 = dma.hbm_to_vmem [thread:$0]  %s0, 128, %s21, [#allocation4]
    $region5: #{tpu_custom_call.1} parent=1 // pred_fallthru
      _
    // Predicated region
    $region6: #{tpu_custom_call.1} parent=1 // pred_check
      _
    $region7: #{tpu_custom_call.1} parent=1 // pred_check_branch
      %25 = sbr.rel (0) target = $region9
    $region8: #{tpu_custom_call.1} parent=1 // pred_region
      _
    $region9: #{tpu_custom_call.1} parent=1 // pred_fallthru
      _
    // Predicated region
    $region10: #{tpu_custom_call.1} parent=1 // pred_check
      _
    $region11: #{tpu_custom_call.1} parent=1 // pred_check_branch
      %27 = sbr.rel (0) target = $region13
    $region12: #{tpu_custom_call.1} parent=1 // pred_region
      _
    $region13: #{tpu_custom_call.1} parent=1 // pred_fallthru
      _
    // Predicated region
    $region14: #{tpu_custom_call.1} parent=1 // pred_check
      _
    $region15: #{tpu_custom_call.1} parent=1 // pred_check_branch
      %29 = sbr.rel (0) target = $region17
    $region16: #{tpu_custom_call.1} parent=1 // pred_region
      _
    $region17: #{tpu_custom_call.1} parent=1 // pred_fallthru
      _
    // Predicated region
    $region18: #{tpu_custom_call.1} parent=1 // pred_check
      _
    $region19: #{tpu_custom_call.1} parent=1 // pred_check_branch
      %31 = sbr.rel (0) target = $region21
    $region20: #{tpu_custom_call.1} parent=1 // pred_region
      %s33 = ssub.s32 16, 16
      %34 = vsyncadd [#allocation6], %s33
      %s36 = sshll.u32 [#allocation5], 4
      %s37 = int_to_ptr.vmem [resolvable:$true] %s36
      %39 = dma.hbm_to_vmem [thread:$0]  %s4, 16, %s37, [#allocation6]
    $region21: #{tpu_custom_call.1} parent=1 // pred_fallthru
      _
    // Predicated region
    $region22: #{tpu_custom_call.1} parent=1 // pred_check
      _
    $region23: #{tpu_custom_call.1} parent=1 // pred_check_branch
      %41 = sbr.rel (0) target = $region25
    $region24: #{tpu_custom_call.1} parent=1 // pred_region
      _
    $region25: #{tpu_custom_call.1} parent=1 // pred_fallthru
      _
    // Predicated region
    $region26: #{tpu_custom_call.1} parent=1 // pred_check
      _
    $region27: #{tpu_custom_call.1} parent=1 // pred_check_branch
      %43 = sbr.rel (0) target = $region29
    $region28: #{tpu_custom_call.1} parent=1 // pred_region
      _
    $region29: #{tpu_custom_call.1} parent=1 // pred_fallthru
      _
    // Predicated region
    $region30: #{tpu_custom_call.1} parent=1 // pred_check
      _
    $region31: #{tpu_custom_call.1} parent=1 // pred_check_branch
      %45 = sbr.rel (0) target = $region33
    $region32: #{tpu_custom_call.1} parent=1 // pred_region
      %46 = dma.done [#allocation4], 128
    $region33: #{tpu_custom_call.1} parent=1 // pred_fallthru
      _
    // Predicated region
    $region34: #{tpu_custom_call.1} parent=1 // pred_check
      _
    $region35: #{tpu_custom_call.1} parent=1 // pred_check_branch
      %48 = sbr.rel (0) target = $region37
    $region36: #{tpu_custom_call.1} parent=1 // pred_region
      %49 = dma.done [#allocation6], 16
    $region37: #{tpu_custom_call.1} parent=1 // pred_fallthru
      _
    %v50 = vld [vmem:[#allocation3] sm:$0xff]
    %v51 = vld [vmem:[%s1] sm:$0xff]
    %v52 = vld [vmem:[%s1 + $0x8] sm:$0xff]
    %v53 = vld [vmem:[%s2] sm:$0x3]
    %v55 = vlaneseq
    %v56 = vshrl.u32 %v55, 7
    %v57 = vsub.s32 0, %v56
    %v58 = vrot.slane %v53, %v57
    %v59 = vlaneseq
    %v60 = vshrl.u32 %v59, 7
    %v61 = vsub.s32 1, %v60
    %v62 = vrot.slane %v53, %v61
    %vm65 = vcmask 64512
    %v67 = vsel %vm65, %v50, 0
    %69 = vmatprep.subr.mxu0 %v52
    %70 = vmatpush1.msra.mxu0 %v51
    %71 = vmatprep.subr.mxu0 0.0
    %72 = vmatpush1.msra.mxu0 0.0
    %73 = vmatprep.subr.mxu0 0.0
    %74 = vmatpush1.msra.mxu0 0.0
    %75 = vmatprep.subr.mxu0 0.0
    %76 = vmatpush1.msra.mxu0 0.0
    %77 = vmatprep.subr.mxu0 0.0
    %78 = vmatpush1.msra.mxu0 0.0
    %79 = vmatprep.subr.mxu0 0.0
    %80 = vmatpush1.msra.mxu0 0.0
    %81 = vmatprep.subr.mxu0 0.0
    %82 = vmatpush1.msra.mxu0 0.0
    %83 = vmatprep.subr.mxu0 0.0
    %84 = vmatpush1.msra.mxu0 0.0
    %85 = vmatprep.subr.mxu0 0.0
    %86 = vmatpush1.msra.mxu0 0.0
    %87 = vmatprep.subr.mxu0 0.0
    %88 = vmatpush1.msra.mxu0 0.0
    %89 = vmatprep.subr.mxu0 0.0
    %90 = vmatpush1.msra.mxu0 0.0
    %91 = vmatprep.subr.mxu0 0.0
    %92 = vmatpush1.msra.mxu0 0.0
    %93 = vmatprep.subr.mxu0 0.0
    %94 = vmatpush1.msra.mxu0 0.0
    %95 = vmatprep.subr.mxu0 0.0
    %96 = vmatpush1.msra.mxu0 0.0
    %97 = vmatprep.subr.mxu0 0.0
    %98 = vmatpush1.msra.mxu0 0.0
    %99 = vmatprep.subr.mxu0 0.0
    %100 = vmatpush1.msra.mxu0 0.0
    %101 = vmatprep.subr.mxu0 0.0
    %102 = vmatpush1.msra.mxu0 0.0
    %103 = vmatprep.subr.mxu0 0.0
    %104 = vmatpush1.msra.mxu0 0.0
    %105 = vmatprep.subr.mxu0 0.0
    %106 = vmatpush1.msra.mxu0 0.0
    %107 = vmatprep.subr.mxu0 0.0
    %108 = vmatpush1.msra.mxu0 0.0
    %109 = vmatprep.subr.mxu0 0.0
    %110 = vmatpush1.msra.mxu0 0.0
    %111 = vmatprep.subr.mxu0 0.0
    %112 = vmatpush1.msra.mxu0 0.0
    %113 = vmatprep.subr.mxu0 0.0
    %114 = vmatpush1.msra.mxu0 0.0
    %115 = vmatprep.subr.mxu0 0.0
    %116 = vmatpush1.msra.mxu0 0.0
    %117 = vmatprep.subr.mxu0 0.0
    %118 = vmatpush1.msra.mxu0 0.0
    %119 = vmatprep.subr.mxu0 0.0
    %120 = vmatpush1.msra.mxu0 0.0
    %121 = vmatprep.subr.mxu0 0.0
    %122 = vmatpush1.msra.mxu0 0.0
    %123 = vmatprep.subr.mxu0 0.0
    %124 = vmatpush1.msra.mxu0 0.0
    %125 = vmatprep.subr.mxu0 0.0
    %126 = vmatpush1.msra.mxu0 0.0
    %127 = vmatprep.subr.mxu0 0.0
    %128 = vmatpush1.msra.mxu0 0.0
    %129 = vmatprep.subr.mxu0 0.0
    %130 = vmatpush1.msra.mxu0 0.0
    %131 = vmatprep.subr.mxu0 0.0
    %132 = vmatpush1.msra.mxu0 0.0
    %133 = vmatprep.mubr.f32.mxu0 0.0
    %134 = vmatmul.mubr.f32.gmra.mrb[0].mxu0 %v67
    %v135 = vpop.f32.mrb[0].mxu0
    %v136 = vadd.f32 %v58, %v135
    %v137 = vpop.f32.mrb[0].mxu0
    %v138 = vadd.f32 %v62, %v137
    %139 = vdwg.mxu0
    %v140 = vsub.f32 0.0, %v136
    %v141 = vmul.f32 %v140, 1.442695
    %v142 = vpow.pop %v141
    %v143 = vadd.f32 %v142, 1.0
    %v144 = vrcp.pop %v143
    %v145 = vtanh.pop %v136
    %147 = vrot.lane.b32.xlu0 %v138, 32
    %v148 = vpop.permute.xlu0 %147
    %v150 = vmul.f32 %v144, %v148
    %152 = vrot.lane.b32.xlu0 %v145, 64
    %v153 = vpop.permute.xlu0 %152
    %v155 = vmul.f32 %v144, %v153
    %157 = vrot.lane.b32.xlu0 %v155, 32
    %v158 = vpop.permute.xlu0 %157
    %v160 = vadd.f32 %v150, %v158
    %v161 = vtanh.pop %v160
    %163 = vrot.lane.b32.xlu0 %v161, 64
    %v164 = vpop.permute.xlu0 %163
    %v166 = vmul.f32 %v144, %v164
    %168 = vrot.lane.b32.xlu0 %v166, 32
    %v169 = vpop.permute.xlu0 %168
    %vm171 = vcmask 261120
    %172 = vst.msk [vmem:[#allocation2] sm:$0xff] %vm171, %v169
    %v173 = vld [vmem:[#allocation5] sm:$0x1]
    %v175 = vlaneseq
    %v176 = vshrl.u32 %v175, 7
    %v177 = vsub.s32 0, %v176
    %v178 = vrot.slane %v173, %v177
    %v180 = vld [vmem:[%s3] sm:$0xff]
    %v181 = vld [vmem:[%s3 + $0x8] sm:$0xff]
    %v182 = vld [vmem:[%s3 + $0x10] sm:$0xff]
    %v183 = vld [vmem:[%s3 + $0x18] sm:$0xff]
    %v184 = vsel %vm171, %v169, 0
    %186 = vmatprep.subr.mxu0 0.0
    %187 = vmatpush1.msra.mxu0 %v180
    %188 = vmatprep.subr.mxu0 0.0
    %189 = vmatpush1.msra.mxu0 %v181
    %190 = vmatprep.subr.mxu0 0.0
    %191 = vmatpush1.msra.mxu0 %v182
    %192 = vmatprep.subr.mxu0 0.0
    %193 = vmatpush1.msra.mxu0 %v183
    %194 = vmatprep.subr.mxu0 0.0
    %195 = vmatpush1.msra.mxu0 0.0
    %196 = vmatprep.subr.mxu0 0.0
    %197 = vmatpush1.msra.mxu0 0.0
    %198 = vmatprep.subr.mxu0 0.0
    %199 = vmatpush1.msra.mxu0 0.0
    %200 = vmatprep.subr.mxu0 0.0
    %201 = vmatpush1.msra.mxu0 0.0
    %202 = vmatprep.subr.mxu0 0.0
    %203 = vmatpush1.msra.mxu0 0.0
    %204 = vmatprep.subr.mxu0 0.0
    %205 = vmatpush1.msra.mxu0 0.0
    %206 = vmatprep.subr.mxu0 0.0
    %207 = vmatpush1.msra.mxu0 0.0
    %208 = vmatprep.subr.mxu0 0.0
    %209 = vmatpush1.msra.mxu0 0.0
    %210 = vmatprep.subr.mxu0 0.0
    %211 = vmatpush1.msra.mxu0 0.0
    %212 = vmatprep.subr.mxu0 0.0
    %213 = vmatpush1.msra.mxu0 0.0
    %214 = vmatprep.subr.mxu0 0.0
    %215 = vmatpush1.msra.mxu0 0.0
    %216 = vmatprep.subr.mxu0 0.0
    %217 = vmatpush1.msra.mxu0 0.0
    %218 = vmatprep.subr.mxu0 0.0
    %219 = vmatpush1.msra.mxu0 0.0
    %220 = vmatprep.subr.mxu0 0.0
    %221 = vmatpush1.msra.mxu0 0.0
    %222 = vmatprep.subr.mxu0 0.0
    %223 = vmatpush1.msra.mxu0 0.0
    %224 = vmatprep.subr.mxu0 0.0
    %225 = vmatpush1.msra.mxu0 0.0
    %226 = vmatprep.subr.mxu0 0.0
    %227 = vmatpush1.msra.mxu0 0.0
    %228 = vmatprep.subr.mxu0 0.0
    %229 = vmatpush1.msra.mxu0 0.0
    %230 = vmatprep.subr.mxu0 0.0
    %231 = vmatpush1.msra.mxu0 0.0
    %232 = vmatprep.subr.mxu0 0.0
    %233 = vmatpush1.msra.mxu0 0.0
    %234 = vmatprep.subr.mxu0 0.0
    %235 = vmatpush1.msra.mxu0 0.0
    %236 = vmatprep.subr.mxu0 0.0
    %237 = vmatpush1.msra.mxu0 0.0
    %238 = vmatprep.subr.mxu0 0.0
    %239 = vmatpush1.msra.mxu0 0.0
    %240 = vmatprep.subr.mxu0 0.0
    %241 = vmatpush1.msra.mxu0 0.0
    %242 = vmatprep.subr.mxu0 0.0
    %243 = vmatpush1.msra.mxu0 0.0
    %244 = vmatprep.subr.mxu0 0.0
    %245 = vmatpush1.msra.mxu0 0.0
    %246 = vmatprep.subr.mxu0 0.0
    %247 = vmatpush1.msra.mxu0 0.0
    %248 = vmatprep.subr.mxu0 0.0
    %249 = vmatpush1.msra.mxu0 0.0
    %250 = vmatprep.mubr.f32.mxu0 0.0
    %251 = vmatmul.mubr.f32.gmra.mrb[0].mxu0 %v184
    %v252 = vpop.f32.mrb[0].mxu0
    %v253 = vadd.f32 %v178, %v252
    %v254 = vpop.f32.mrb[0].mxu0
    %255 = vdwg.mxu0
    %v256 = vsub.f32 0.0, %v253
    %v257 = vmul.f32 %v256, 1.442695
    %v258 = vpow.pop %v257
    %v259 = vadd.f32 %v258, 1.0
    %v260 = vrcp.pop %v259
    %v261 = vtanh.pop %v253
    %v262 = vmul.f32 %v260, %v160
    %264 = vrot.lane.b32.xlu0 %v261, 64
    %v265 = vpop.permute.xlu0 %264
    %v267 = vmul.f32 %v260, %v265
    %269 = vrot.lane.b32.xlu0 %v267, 32
    %v270 = vpop.permute.xlu0 %269
    %v272 = vadd.f32 %v262, %v270
    %v273 = vtanh.pop %v272
    %275 = vrot.lane.b32.xlu0 %v273, 64
    %v276 = vpop.permute.xlu0 %275
    %v278 = vmul.f32 %v260, %v276
    %280 = vrot.lane.b32.xlu0 %v278, 32
    %v281 = vpop.permute.xlu0 %280
    %283 = vst.msk [vmem:[#allocation2 + $0x8] sm:$0xff] %vm171, %v281
    %v284 = vld [vmem:[%s3] sm:$0xff]
    %v285 = vld [vmem:[%s3 + $0x8] sm:$0xff]
    %v286 = vld [vmem:[%s3 + $0x10] sm:$0xff]
    %v287 = vld [vmem:[%s3 + $0x18] sm:$0xff]
    %v288 = vsel %vm171, %v281, 0
    %290 = vmatprep.subr.mxu0 0.0
    %291 = vmatpush1.msra.mxu0 %v284
    %292 = vmatprep.subr.mxu0 0.0
    %293 = vmatpush1.msra.mxu0 %v285
    %294 = vmatprep.subr.mxu0 0.0
    %295 = vmatpush1.msra.mxu0 %v286
    %296 = vmatprep.subr.mxu0 0.0
    %297 = vmatpush1.msra.mxu0 %v287
    %298 = vmatprep.subr.mxu0 0.0
    %299 = vmatpush1.msra.mxu0 0.0
    %300 = vmatprep.subr.mxu0 0.0
    %301 = vmatpush1.msra.mxu0 0.0
    %302 = vmatprep.subr.mxu0 0.0
    %303 = vmatpush1.msra.mxu0 0.0
    %304 = vmatprep.subr.mxu0 0.0
    %305 = vmatpush1.msra.mxu0 0.0
    %306 = vmatprep.subr.mxu0 0.0
    %307 = vmatpush1.msra.mxu0 0.0
    %308 = vmatprep.subr.mxu0 0.0
    %309 = vmatpush1.msra.mxu0 0.0
    %310 = vmatprep.subr.mxu0 0.0
    %311 = vmatpush1.msra.mxu0 0.0
    %312 = vmatprep.subr.mxu0 0.0
    %313 = vmatpush1.msra.mxu0 0.0
    %314 = vmatprep.subr.mxu0 0.0
    %315 = vmatpush1.msra.mxu0 0.0
    %316 = vmatprep.subr.mxu0 0.0
    %317 = vmatpush1.msra.mxu0 0.0
    %318 = vmatprep.subr.mxu0 0.0
    %319 = vmatpush1.msra.mxu0 0.0
    %320 = vmatprep.subr.mxu0 0.0
    %321 = vmatpush1.msra.mxu0 0.0
    %322 = vmatprep.subr.mxu0 0.0
    %323 = vmatpush1.msra.mxu0 0.0
    %324 = vmatprep.subr.mxu0 0.0
    %325 = vmatpush1.msra.mxu0 0.0
    %326 = vmatprep.subr.mxu0 0.0
    %327 = vmatpush1.msra.mxu0 0.0
    %328 = vmatprep.subr.mxu0 0.0
    %329 = vmatpush1.msra.mxu0 0.0
    %330 = vmatprep.subr.mxu0 0.0
    %331 = vmatpush1.msra.mxu0 0.0
    %332 = vmatprep.subr.mxu0 0.0
    %333 = vmatpush1.msra.mxu0 0.0
    %334 = vmatprep.subr.mxu0 0.0
    %335 = vmatpush1.msra.mxu0 0.0
    %336 = vmatprep.subr.mxu0 0.0
    %337 = vmatpush1.msra.mxu0 0.0
    %338 = vmatprep.subr.mxu0 0.0
    %339 = vmatpush1.msra.mxu0 0.0
    %340 = vmatprep.subr.mxu0 0.0
    %341 = vmatpush1.msra.mxu0 0.0
    %342 = vmatprep.subr.mxu0 0.0
    %343 = vmatpush1.msra.mxu0 0.0
    %344 = vmatprep.subr.mxu0 0.0
    %345 = vmatpush1.msra.mxu0 0.0
    %346 = vmatprep.subr.mxu0 0.0
    %347 = vmatpush1.msra.mxu0 0.0
    %348 = vmatprep.subr.mxu0 0.0
    %349 = vmatpush1.msra.mxu0 0.0
    %350 = vmatprep.subr.mxu0 0.0
    %351 = vmatpush1.msra.mxu0 0.0
    %352 = vmatprep.subr.mxu0 0.0
    %353 = vmatpush1.msra.mxu0 0.0
    %354 = vmatprep.mubr.f32.mxu0 0.0
    %355 = vmatmul.mubr.f32.gmra.mrb[0].mxu0 %v288
    %v356 = vpop.f32.mrb[0].mxu0
    %v357 = vadd.f32 %v178, %v356
    %v358 = vpop.f32.mrb[0].mxu0
    %359 = vdwg.mxu0
    %v360 = vsub.f32 0.0, %v357
    %v361 = vmul.f32 %v360, 1.442695
    %v362 = vpow.pop %v361
    %v363 = vadd.f32 %v362, 1.0
    %v364 = vrcp.pop %v363
    %v365 = vtanh.pop %v357
    %v366 = vmul.f32 %v364, %v272
    %368 = vrot.lane.b32.xlu0 %v365, 64
    %v369 = vpop.permute.xlu0 %368
    %v371 = vmul.f32 %v364, %v369
    %373 = vrot.lane.b32.xlu0 %v371, 32
    %v374 = vpop.permute.xlu0 %373
    %v376 = vadd.f32 %v366, %v374
    %v377 = vtanh.pop %v376
    %379 = vrot.lane.b32.xlu0 %v377, 64
    %v380 = vpop.permute.xlu0 %379
    %v382 = vmul.f32 %v364, %v380
    %384 = vrot.lane.b32.xlu0 %v382, 32
    %v385 = vpop.permute.xlu0 %384
    %387 = vst.msk [vmem:[#allocation2 + $0x10] sm:$0xff] %vm171, %v385
    %v388 = vld [vmem:[%s3] sm:$0xff]
    %v389 = vld [vmem:[%s3 + $0x8] sm:$0xff]
    %v390 = vld [vmem:[%s3 + $0x10] sm:$0xff]
    %v391 = vld [vmem:[%s3 + $0x18] sm:$0xff]
    %v392 = vsel %vm171, %v385, 0
    %394 = vmatprep.subr.mxu0 0.0
    %395 = vmatpush1.msra.mxu0 %v388
    %396 = vmatprep.subr.mxu0 0.0
    %397 = vmatpush1.msra.mxu0 %v389
    %398 = vmatprep.subr.mxu0 0.0
    %399 = vmatpush1.msra.mxu0 %v390
    %400 = vmatprep.subr.mxu0 0.0
    %401 = vmatpush1.msra.mxu0 %v391
    %402 = vmatprep.subr.mxu0 0.0
    %403 = vmatpush1.msra.mxu0 0.0
    %404 = vmatprep.subr.mxu0 0.0
    %405 = vmatpush1.msra.mxu0 0.0
    %406 = vmatprep.subr.mxu0 0.0
    %407 = vmatpush1.msra.mxu0 0.0
    %408 = vmatprep.subr.mxu0 0.0
    %409 = vmatpush1.msra.mxu0 0.0
    %410 = vmatprep.subr.mxu0 0.0
    %411 = vmatpush1.msra.mxu0 0.0
    %412 = vmatprep.subr.mxu0 0.0
    %413 = vmatpush1.msra.mxu0 0.0
    %414 = vmatprep.subr.mxu0 0.0
    %415 = vmatpush1.msra.mxu0 0.0
    %416 = vmatprep.subr.mxu0 0.0
    %417 = vmatpush1.msra.mxu0 0.0
    %418 = vmatprep.subr.mxu0 0.0
    %419 = vmatpush1.msra.mxu0 0.0
    %420 = vmatprep.subr.mxu0 0.0
    %421 = vmatpush1.msra.mxu0 0.0
    %422 = vmatprep.subr.mxu0 0.0
    %423 = vmatpush1.msra.mxu0 0.0
    %424 = vmatprep.subr.mxu0 0.0
    %425 = vmatpush1.msra.mxu0 0.0
    %426 = vmatprep.subr.mxu0 0.0
    %427 = vmatpush1.msra.mxu0 0.0
    %428 = vmatprep.subr.mxu0 0.0
    %429 = vmatpush1.msra.mxu0 0.0
    %430 = vmatprep.subr.mxu0 0.0
    %431 = vmatpush1.msra.mxu0 0.0
    %432 = vmatprep.subr.mxu0 0.0
    %433 = vmatpush1.msra.mxu0 0.0
    %434 = vmatprep.subr.mxu0 0.0
    %435 = vmatpush1.msra.mxu0 0.0
    %436 = vmatprep.subr.mxu0 0.0
    %437 = vmatpush1.msra.mxu0 0.0
    %438 = vmatprep.subr.mxu0 0.0
    %439 = vmatpush1.msra.mxu0 0.0
    %440 = vmatprep.subr.mxu0 0.0
    %441 = vmatpush1.msra.mxu0 0.0
    %442 = vmatprep.subr.mxu0 0.0
    %443 = vmatpush1.msra.mxu0 0.0
    %444 = vmatprep.subr.mxu0 0.0
    %445 = vmatpush1.msra.mxu0 0.0
    %446 = vmatprep.subr.mxu0 0.0
    %447 = vmatpush1.msra.mxu0 0.0
    %448 = vmatprep.subr.mxu0 0.0
    %449 = vmatpush1.msra.mxu0 0.0
    %450 = vmatprep.subr.mxu0 0.0
    %451 = vmatpush1.msra.mxu0 0.0
    %452 = vmatprep.subr.mxu0 0.0
    %453 = vmatpush1.msra.mxu0 0.0
    %454 = vmatprep.subr.mxu0 0.0
    %455 = vmatpush1.msra.mxu0 0.0
    %456 = vmatprep.subr.mxu0 0.0
    %457 = vmatpush1.msra.mxu0 0.0
    %458 = vmatprep.mubr.f32.mxu0 0.0
    %459 = vmatmul.mubr.f32.gmra.mrb[0].mxu0 %v392
    %v460 = vpop.f32.mrb[0].mxu0
    %v461 = vadd.f32 %v178, %v460
    %v462 = vpop.f32.mrb[0].mxu0
    %463 = vdwg.mxu0
    %v464 = vsub.f32 0.0, %v461
    %v465 = vmul.f32 %v464, 1.442695
    %v466 = vpow.pop %v465
    %v467 = vadd.f32 %v466, 1.0
    %v468 = vrcp.pop %v467
    %v469 = vtanh.pop %v461
    %v470 = vmul.f32 %v468, %v376
    %472 = vrot.lane.b32.xlu0 %v469, 64
    %v473 = vpop.permute.xlu0 %472
    %v475 = vmul.f32 %v468, %v473
    %477 = vrot.lane.b32.xlu0 %v475, 32
    %v478 = vpop.permute.xlu0 %477
    %v480 = vadd.f32 %v470, %v478
    %v481 = vtanh.pop %v480
    %483 = vrot.lane.b32.xlu0 %v481, 64
    %v484 = vpop.permute.xlu0 %483
    %v486 = vmul.f32 %v468, %v484
    %488 = vrot.lane.b32.xlu0 %v486, 32
    %v489 = vpop.permute.xlu0 %488
    %491 = vst.msk [vmem:[#allocation2 + $0x18] sm:$0xff] %vm171, %v489
    %v492 = vld [vmem:[%s3] sm:$0xff]
    %v493 = vld [vmem:[%s3 + $0x8] sm:$0xff]
    %v494 = vld [vmem:[%s3 + $0x10] sm:$0xff]
    %v495 = vld [vmem:[%s3 + $0x18] sm:$0xff]
    %v496 = vsel %vm171, %v489, 0
    %498 = vmatprep.subr.mxu0 0.0
    %499 = vmatpush1.msra.mxu0 %v492
    %500 = vmatprep.subr.mxu0 0.0
    %501 = vmatpush1.msra.mxu0 %v493
    %502 = vmatprep.subr.mxu0 0.0
    %503 = vmatpush1.msra.mxu0 %v494
    %504 = vmatprep.subr.mxu0 0.0
    %505 = vmatpush1.msra.mxu0 %v495
    %506 = vmatprep.subr.mxu0 0.0
    %507 = vmatpush1.msra.mxu0 0.0
    %508 = vmatprep.subr.mxu0 0.0
    %509 = vmatpush1.msra.mxu0 0.0
    %510 = vmatprep.subr.mxu0 0.0
    %511 = vmatpush1.msra.mxu0 0.0
    %512 = vmatprep.subr.mxu0 0.0
    %513 = vmatpush1.msra.mxu0 0.0
    %514 = vmatprep.subr.mxu0 0.0
    %515 = vmatpush1.msra.mxu0 0.0
    %516 = vmatprep.subr.mxu0 0.0
    %517 = vmatpush1.msra.mxu0 0.0
    %518 = vmatprep.subr.mxu0 0.0
    %519 = vmatpush1.msra.mxu0 0.0
    %520 = vmatprep.subr.mxu0 0.0
    %521 = vmatpush1.msra.mxu0 0.0
    %522 = vmatprep.subr.mxu0 0.0
    %523 = vmatpush1.msra.mxu0 0.0
    %524 = vmatprep.subr.mxu0 0.0
    %525 = vmatpush1.msra.mxu0 0.0
    %526 = vmatprep.subr.mxu0 0.0
    %527 = vmatpush1.msra.mxu0 0.0
    %528 = vmatprep.subr.mxu0 0.0
    %529 = vmatpush1.msra.mxu0 0.0
    %530 = vmatprep.subr.mxu0 0.0
    %531 = vmatpush1.msra.mxu0 0.0
    %532 = vmatprep.subr.mxu0 0.0
    %533 = vmatpush1.msra.mxu0 0.0
    %534 = vmatprep.subr.mxu0 0.0
    %535 = vmatpush1.msra.mxu0 0.0
    %536 = vmatprep.subr.mxu0 0.0
    %537 = vmatpush1.msra.mxu0 0.0
    %538 = vmatprep.subr.mxu0 0.0
    %539 = vmatpush1.msra.mxu0 0.0
    %540 = vmatprep.subr.mxu0 0.0
    %541 = vmatpush1.msra.mxu0 0.0
    %542 = vmatprep.subr.mxu0 0.0
    %543 = vmatpush1.msra.mxu0 0.0
    %544 = vmatprep.subr.mxu0 0.0
    %545 = vmatpush1.msra.mxu0 0.0
    %546 = vmatprep.subr.mxu0 0.0
    %547 = vmatpush1.msra.mxu0 0.0
    %548 = vmatprep.subr.mxu0 0.0
    %549 = vmatpush1.msra.mxu0 0.0
    %550 = vmatprep.subr.mxu0 0.0
    %551 = vmatpush1.msra.mxu0 0.0
    %552 = vmatprep.subr.mxu0 0.0
    %553 = vmatpush1.msra.mxu0 0.0
    %554 = vmatprep.subr.mxu0 0.0
    %555 = vmatpush1.msra.mxu0 0.0
    %556 = vmatprep.subr.mxu0 0.0
    %557 = vmatpush1.msra.mxu0 0.0
    %558 = vmatprep.subr.mxu0 0.0
    %559 = vmatpush1.msra.mxu0 0.0
    %560 = vmatprep.subr.mxu0 0.0
    %561 = vmatpush1.msra.mxu0 0.0
    %562 = vmatprep.mubr.f32.mxu0 0.0
    %563 = vmatmul.mubr.f32.gmra.mrb[0].mxu0 %v496
    %v564 = vpop.f32.mrb[0].mxu0
    %v565 = vadd.f32 %v178, %v564
    %v566 = vpop.f32.mrb[0].mxu0
    %567 = vdwg.mxu0
    %v568 = vsub.f32 0.0, %v565
    %v569 = vmul.f32 %v568, 1.442695
    %v570 = vpow.pop %v569
    %v571 = vadd.f32 %v570, 1.0
    %v572 = vrcp.pop %v571
    %v573 = vtanh.pop %v565
    %v574 = vmul.f32 %v572, %v480
    %576 = vrot.lane.b32.xlu0 %v573, 64
    %v577 = vpop.permute.xlu0 %576
    %v579 = vmul.f32 %v572, %v577
    %581 = vrot.lane.b32.xlu0 %v579, 32
    %v582 = vpop.permute.xlu0 %581
    %v584 = vadd.f32 %v574, %v582
    %v585 = vtanh.pop %v584
    %587 = vrot.lane.b32.xlu0 %v585, 64
    %v588 = vpop.permute.xlu0 %587
    %v590 = vmul.f32 %v572, %v588
    %592 = vrot.lane.b32.xlu0 %v590, 32
    %v593 = vpop.permute.xlu0 %592
    %595 = vst.msk [vmem:[#allocation2 + $0x20] sm:$0xff] %vm171, %v593
    %v596 = vld [vmem:[%s3] sm:$0xff]
    %v597 = vld [vmem:[%s3 + $0x8] sm:$0xff]
    %v598 = vld [vmem:[%s3 + $0x10] sm:$0xff]
    %v599 = vld [vmem:[%s3 + $0x18] sm:$0xff]
    %v600 = vsel %vm171, %v593, 0
    %602 = vmatprep.subr.mxu0 0.0
    %603 = vmatpush1.msra.mxu0 %v596
    %604 = vmatprep.subr.mxu0 0.0
    %605 = vmatpush1.msra.mxu0 %v597
    %606 = vmatprep.subr.mxu0 0.0
    %607 = vmatpush1.msra.mxu0 %v598
    %608 = vmatprep.subr.mxu0 0.0
    %609 = vmatpush1.msra.mxu0 %v599
    %610 = vmatprep.subr.mxu0 0.0
    %611 = vmatpush1.msra.mxu0 0.0
    %612 = vmatprep.subr.mxu0 0.0
    %613 = vmatpush1.msra.mxu0 0.0
    %614 = vmatprep.subr.mxu0 0.0
    %615 = vmatpush1.msra.mxu0 0.0
    %616 = vmatprep.subr.mxu0 0.0
    %617 = vmatpush1.msra.mxu0 0.0
    %618 = vmatprep.subr.mxu0 0.0
    %619 = vmatpush1.msra.mxu0 0.0
    %620 = vmatprep.subr.mxu0 0.0
    %621 = vmatpush1.msra.mxu0 0.0
    %622 = vmatprep.subr.mxu0 0.0
    %623 = vmatpush1.msra.mxu0 0.0
    %624 = vmatprep.subr.mxu0 0.0
    %625 = vmatpush1.msra.mxu0 0.0
    %626 = vmatprep.subr.mxu0 0.0
    %627 = vmatpush1.msra.mxu0 0.0
    %628 = vmatprep.subr.mxu0 0.0
    %629 = vmatpush1.msra.mxu0 0.0
    %630 = vmatprep.subr.mxu0 0.0
    %631 = vmatpush1.msra.mxu0 0.0
    %632 = vmatprep.subr.mxu0 0.0
    %633 = vmatpush1.msra.mxu0 0.0
    %634 = vmatprep.subr.mxu0 0.0
    %635 = vmatpush1.msra.mxu0 0.0
    %636 = vmatprep.subr.mxu0 0.0
    %637 = vmatpush1.msra.mxu0 0.0
    %638 = vmatprep.subr.mxu0 0.0
    %639 = vmatpush1.msra.mxu0 0.0
    %640 = vmatprep.subr.mxu0 0.0
    %641 = vmatpush1.msra.mxu0 0.0
    %642 = vmatprep.subr.mxu0 0.0
    %643 = vmatpush1.msra.mxu0 0.0
    %644 = vmatprep.subr.mxu0 0.0
    %645 = vmatpush1.msra.mxu0 0.0
    %646 = vmatprep.subr.mxu0 0.0
    %647 = vmatpush1.msra.mxu0 0.0
    %648 = vmatprep.subr.mxu0 0.0
    %649 = vmatpush1.msra.mxu0 0.0
    %650 = vmatprep.subr.mxu0 0.0
    %651 = vmatpush1.msra.mxu0 0.0
    %652 = vmatprep.subr.mxu0 0.0
    %653 = vmatpush1.msra.mxu0 0.0
    %654 = vmatprep.subr.mxu0 0.0
    %655 = vmatpush1.msra.mxu0 0.0
    %656 = vmatprep.subr.mxu0 0.0
    %657 = vmatpush1.msra.mxu0 0.0
    %658 = vmatprep.subr.mxu0 0.0
    %659 = vmatpush1.msra.mxu0 0.0
    %660 = vmatprep.subr.mxu0 0.0
    %661 = vmatpush1.msra.mxu0 0.0
    %662 = vmatprep.subr.mxu0 0.0
    %663 = vmatpush1.msra.mxu0 0.0
    %664 = vmatprep.subr.mxu0 0.0
    %665 = vmatpush1.msra.mxu0 0.0
    %666 = vmatprep.mubr.f32.mxu0 0.0
    %667 = vmatmul.mubr.f32.gmra.mrb[0].mxu0 %v600
    %v668 = vpop.f32.mrb[0].mxu0
    %v669 = vadd.f32 %v178, %v668
    %v670 = vpop.f32.mrb[0].mxu0
    %671 = vdwg.mxu0
    %v672 = vsub.f32 0.0, %v669
    %v673 = vmul.f32 %v672, 1.442695
    %v674 = vpow.pop %v673
    %v675 = vadd.f32 %v674, 1.0
    %v676 = vrcp.pop %v675
    %v677 = vtanh.pop %v669
    %v678 = vmul.f32 %v676, %v584
    %680 = vrot.lane.b32.xlu0 %v677, 64
    %v681 = vpop.permute.xlu0 %680
    %v683 = vmul.f32 %v676, %v681
    %685 = vrot.lane.b32.xlu0 %v683, 32
    %v686 = vpop.permute.xlu0 %685
    %v688 = vadd.f32 %v678, %v686
    %v689 = vtanh.pop %v688
    %691 = vrot.lane.b32.xlu0 %v689, 64
    %v692 = vpop.permute.xlu0 %691
    %v694 = vmul.f32 %v676, %v692
    %696 = vrot.lane.b32.xlu0 %v694, 32
    %v697 = vpop.permute.xlu0 %696
    %699 = vst.msk [vmem:[#allocation2 + $0x28] sm:$0xff] %vm171, %v697
    %v700 = vld [vmem:[%s3] sm:$0xff]
    %v701 = vld [vmem:[%s3 + $0x8] sm:$0xff]
    %v702 = vld [vmem:[%s3 + $0x10] sm:$0xff]
    %v703 = vld [vmem:[%s3 + $0x18] sm:$0xff]
    %v704 = vsel %vm171, %v697, 0
    %706 = vmatprep.subr.mxu0 0.0
    %707 = vmatpush1.msra.mxu0 %v700
    %708 = vmatprep.subr.mxu0 0.0
    %709 = vmatpush1.msra.mxu0 %v701
    %710 = vmatprep.subr.mxu0 0.0
    %711 = vmatpush1.msra.mxu0 %v702
    %712 = vmatprep.subr.mxu0 0.0
    %713 = vmatpush1.msra.mxu0 %v703
    %714 = vmatprep.subr.mxu0 0.0
    %715 = vmatpush1.msra.mxu0 0.0
    %716 = vmatprep.subr.mxu0 0.0
    %717 = vmatpush1.msra.mxu0 0.0
    %718 = vmatprep.subr.mxu0 0.0
    %719 = vmatpush1.msra.mxu0 0.0
    %720 = vmatprep.subr.mxu0 0.0
    %721 = vmatpush1.msra.mxu0 0.0
    %722 = vmatprep.subr.mxu0 0.0
    %723 = vmatpush1.msra.mxu0 0.0
    %724 = vmatprep.subr.mxu0 0.0
    %725 = vmatpush1.msra.mxu0 0.0
    %726 = vmatprep.subr.mxu0 0.0
    %727 = vmatpush1.msra.mxu0 0.0
    %728 = vmatprep.subr.mxu0 0.0
    %729 = vmatpush1.msra.mxu0 0.0
    %730 = vmatprep.subr.mxu0 0.0
    %731 = vmatpush1.msra.mxu0 0.0
    %732 = vmatprep.subr.mxu0 0.0
    %733 = vmatpush1.msra.mxu0 0.0
    %734 = vmatprep.subr.mxu0 0.0
    %735 = vmatpush1.msra.mxu0 0.0
    %736 = vmatprep.subr.mxu0 0.0
    %737 = vmatpush1.msra.mxu0 0.0
    %738 = vmatprep.subr.mxu0 0.0
    %739 = vmatpush1.msra.mxu0 0.0
    %740 = vmatprep.subr.mxu0 0.0
    %741 = vmatpush1.msra.mxu0 0.0
    %742 = vmatprep.subr.mxu0 0.0
    %743 = vmatpush1.msra.mxu0 0.0
    %744 = vmatprep.subr.mxu0 0.0
    %745 = vmatpush1.msra.mxu0 0.0
    %746 = vmatprep.subr.mxu0 0.0
    %747 = vmatpush1.msra.mxu0 0.0
    %748 = vmatprep.subr.mxu0 0.0
    %749 = vmatpush1.msra.mxu0 0.0
    %750 = vmatprep.subr.mxu0 0.0
    %751 = vmatpush1.msra.mxu0 0.0
    %752 = vmatprep.subr.mxu0 0.0
    %753 = vmatpush1.msra.mxu0 0.0
    %754 = vmatprep.subr.mxu0 0.0
    %755 = vmatpush1.msra.mxu0 0.0
    %756 = vmatprep.subr.mxu0 0.0
    %757 = vmatpush1.msra.mxu0 0.0
    %758 = vmatprep.subr.mxu0 0.0
    %759 = vmatpush1.msra.mxu0 0.0
    %760 = vmatprep.subr.mxu0 0.0
    %761 = vmatpush1.msra.mxu0 0.0
    %762 = vmatprep.subr.mxu0 0.0
    %763 = vmatpush1.msra.mxu0 0.0
    %764 = vmatprep.subr.mxu0 0.0
    %765 = vmatpush1.msra.mxu0 0.0
    %766 = vmatprep.subr.mxu0 0.0
    %767 = vmatpush1.msra.mxu0 0.0
    %768 = vmatprep.subr.mxu0 0.0
    %769 = vmatpush1.msra.mxu0 0.0
    %770 = vmatprep.mubr.f32.mxu0 0.0
    %771 = vmatmul.mubr.f32.gmra.mrb[0].mxu0 %v704
    %v772 = vpop.f32.mrb[0].mxu0
    %v773 = vadd.f32 %v178, %v772
    %v774 = vpop.f32.mrb[0].mxu0
    %775 = vdwg.mxu0
    %v776 = vsub.f32 0.0, %v773
    %v777 = vmul.f32 %v776, 1.442695
    %v778 = vpow.pop %v777
    %v779 = vadd.f32 %v778, 1.0
    %v780 = vrcp.pop %v779
    %v781 = vtanh.pop %v773
    %v782 = vmul.f32 %v780, %v688
    %784 = vrot.lane.b32.xlu0 %v781, 64
    %v785 = vpop.permute.xlu0 %784
    %v787 = vmul.f32 %v780, %v785
    %789 = vrot.lane.b32.xlu0 %v787, 32
    %v790 = vpop.permute.xlu0 %789
    %v792 = vadd.f32 %v782, %v790
    %v793 = vtanh.pop %v792
    %795 = vrot.lane.b32.xlu0 %v793, 64
    %v796 = vpop.permute.xlu0 %795
    %v798 = vmul.f32 %v780, %v796
    %800 = vrot.lane.b32.xlu0 %v798, 32
    %v801 = vpop.permute.xlu0 %800
    %803 = vst.msk [vmem:[#allocation2 + $0x30] sm:$0xff] %vm171, %v801
    %v804 = vld [vmem:[%s3] sm:$0xff]
    %v805 = vld [vmem:[%s3 + $0x8] sm:$0xff]
    %v806 = vld [vmem:[%s3 + $0x10] sm:$0xff]
    %v807 = vld [vmem:[%s3 + $0x18] sm:$0xff]
    %v808 = vsel %vm171, %v801, 0
    %810 = vmatprep.subr.mxu0 0.0
    %811 = vmatpush1.msra.mxu0 %v804
    %812 = vmatprep.subr.mxu0 0.0
    %813 = vmatpush1.msra.mxu0 %v805
    %814 = vmatprep.subr.mxu0 0.0
    %815 = vmatpush1.msra.mxu0 %v806
    %816 = vmatprep.subr.mxu0 0.0
    %817 = vmatpush1.msra.mxu0 %v807
    %818 = vmatprep.subr.mxu0 0.0
    %819 = vmatpush1.msra.mxu0 0.0
    %820 = vmatprep.subr.mxu0 0.0
    %821 = vmatpush1.msra.mxu0 0.0
    %822 = vmatprep.subr.mxu0 0.0
    %823 = vmatpush1.msra.mxu0 0.0
    %824 = vmatprep.subr.mxu0 0.0
    %825 = vmatpush1.msra.mxu0 0.0
    %826 = vmatprep.subr.mxu0 0.0
    %827 = vmatpush1.msra.mxu0 0.0
    %828 = vmatprep.subr.mxu0 0.0
    %829 = vmatpush1.msra.mxu0 0.0
    %830 = vmatprep.subr.mxu0 0.0
    %831 = vmatpush1.msra.mxu0 0.0
    %832 = vmatprep.subr.mxu0 0.0
    %833 = vmatpush1.msra.mxu0 0.0
    %834 = vmatprep.subr.mxu0 0.0
    %835 = vmatpush1.msra.mxu0 0.0
    %836 = vmatprep.subr.mxu0 0.0
    %837 = vmatpush1.msra.mxu0 0.0
    %838 = vmatprep.subr.mxu0 0.0
    %839 = vmatpush1.msra.mxu0 0.0
    %840 = vmatprep.subr.mxu0 0.0
    %841 = vmatpush1.msra.mxu0 0.0
    %842 = vmatprep.subr.mxu0 0.0
    %843 = vmatpush1.msra.mxu0 0.0
    %844 = vmatprep.subr.mxu0 0.0
    %845 = vmatpush1.msra.mxu0 0.0
    %846 = vmatprep.subr.mxu0 0.0
    %847 = vmatpush1.msra.mxu0 0.0
    %848 = vmatprep.subr.mxu0 0.0
    %849 = vmatpush1.msra.mxu0 0.0
    %850 = vmatprep.subr.mxu0 0.0
    %851 = vmatpush1.msra.mxu0 0.0
    %852 = vmatprep.subr.mxu0 0.0
    %853 = vmatpush1.msra.mxu0 0.0
    %854 = vmatprep.subr.mxu0 0.0
    %855 = vmatpush1.msra.mxu0 0.0
    %856 = vmatprep.subr.mxu0 0.0
    %857 = vmatpush1.msra.mxu0 0.0
    %858 = vmatprep.subr.mxu0 0.0
    %859 = vmatpush1.msra.mxu0 0.0
    %860 = vmatprep.subr.mxu0 0.0
    %861 = vmatpush1.msra.mxu0 0.0
    %862 = vmatprep.subr.mxu0 0.0
    %863 = vmatpush1.msra.mxu0 0.0
    %864 = vmatprep.subr.mxu0 0.0
    %865 = vmatpush1.msra.mxu0 0.0
    %866 = vmatprep.subr.mxu0 0.0
    %867 = vmatpush1.msra.mxu0 0.0
    %868 = vmatprep.subr.mxu0 0.0
    %869 = vmatpush1.msra.mxu0 0.0
    %870 = vmatprep.subr.mxu0 0.0
    %871 = vmatpush1.msra.mxu0 0.0
    %872 = vmatprep.subr.mxu0 0.0
    %873 = vmatpush1.msra.mxu0 0.0
    %874 = vmatprep.mubr.f32.mxu0 0.0
    %875 = vmatmul.mubr.f32.gmra.mrb[0].mxu0 %v808
    %v876 = vpop.f32.mrb[0].mxu0
    %v877 = vadd.f32 %v178, %v876
    %v878 = vpop.f32.mrb[0].mxu0
    %879 = vdwg.mxu0
    %v880 = vsub.f32 0.0, %v877
    %v881 = vmul.f32 %v880, 1.442695
    %v882 = vpow.pop %v881
    %v883 = vadd.f32 %v882, 1.0
    %v884 = vrcp.pop %v883
    %v885 = vtanh.pop %v877
    %v886 = vmul.f32 %v884, %v792
    %888 = vrot.lane.b32.xlu0 %v885, 64
    %v889 = vpop.permute.xlu0 %888
    %v891 = vmul.f32 %v884, %v889
    %893 = vrot.lane.b32.xlu0 %v891, 32
    %v894 = vpop.permute.xlu0 %893
    %v896 = vadd.f32 %v886, %v894
    %v897 = vtanh.pop %v896
    %899 = vrot.lane.b32.xlu0 %v897, 64
    %v900 = vpop.permute.xlu0 %899
    %v902 = vmul.f32 %v884, %v900
    %904 = vrot.lane.b32.xlu0 %v902, 32
    %v905 = vpop.permute.xlu0 %904
    %907 = vst.msk [vmem:[#allocation2 + $0x38] sm:$0xff] %vm171, %v905
    %v908 = vld [vmem:[#allocation2] sm:$0xff]
    %v909 = vld [vmem:[#allocation2 + $0x8] sm:$0xff]
    %v910 = vld [vmem:[#allocation2 + $0x10] sm:$0xff]
    %v911 = vld [vmem:[#allocation2 + $0x18] sm:$0xff]
    %v912 = vld [vmem:[#allocation2 + $0x20] sm:$0xff]
    %v913 = vld [vmem:[#allocation2 + $0x28] sm:$0xff]
    %v914 = vld [vmem:[#allocation2 + $0x30] sm:$0xff]
    %v915 = vld [vmem:[#allocation2 + $0x38] sm:$0xff]
    %v916 = vld [vmem:[%s5] sm:$0xff]
    %v917 = vld [vmem:[%s5 + $0x8] sm:$0xff]
    %v918 = vld [vmem:[%s5 + $0x10] sm:$0xff]
    %v919 = vld [vmem:[%s5 + $0x18] sm:$0xff]
    %v920 = vld [vmem:[%s6] sm:$0x1]
    %v922 = vlaneseq
    %v923 = vshrl.u32 %v922, 7
    %v924 = vsub.s32 0, %v923
    %v925 = vrot.slane %v920, %v924
    %v928 = vsel %vm171, %v908, 0
    %v931 = vsel %vm171, %v909, 0
    %v934 = vsel %vm171, %v910, 0
    %v937 = vsel %vm171, %v911, 0
    %v940 = vsel %vm171, %v912, 0
    %v943 = vsel %vm171, %v913, 0
    %v946 = vsel %vm171, %v914, 0
    %v949 = vsel %vm171, %v915, 0
    %951 = vmatprep.subr.mxu0 0.0
    %952 = vmatpush1.msra.mxu0 %v916
    %953 = vmatprep.subr.mxu0 0.0
    %954 = vmatpush1.msra.mxu0 %v917
    %955 = vmatprep.subr.mxu0 0.0
    %956 = vmatpush1.msra.mxu0 %v918
    %957 = vmatprep.subr.mxu0 0.0
    %958 = vmatpush1.msra.mxu0 %v919
    %959 = vmatprep.subr.mxu0 0.0
    %960 = vmatpush1.msra.mxu0 0.0
    %961 = vmatprep.subr.mxu0 0.0
    %962 = vmatpush1.msra.mxu0 0.0
    %963 = vmatprep.subr.mxu0 0.0
    %964 = vmatpush1.msra.mxu0 0.0
    %965 = vmatprep.subr.mxu0 0.0
    %966 = vmatpush1.msra.mxu0 0.0
    %967 = vmatprep.subr.mxu0 0.0
    %968 = vmatpush1.msra.mxu0 0.0
    %969 = vmatprep.subr.mxu0 0.0
    %970 = vmatpush1.msra.mxu0 0.0
    %971 = vmatprep.subr.mxu0 0.0
    %972 = vmatpush1.msra.mxu0 0.0
    %973 = vmatprep.subr.mxu0 0.0
    %974 = vmatpush1.msra.mxu0 0.0
    %975 = vmatprep.subr.mxu0 0.0
    %976 = vmatpush1.msra.mxu0 0.0
    %977 = vmatprep.subr.mxu0 0.0
    %978 = vmatpush1.msra.mxu0 0.0
    %979 = vmatprep.subr.mxu0 0.0
    %980 = vmatpush1.msra.mxu0 0.0
    %981 = vmatprep.subr.mxu0 0.0
    %982 = vmatpush1.msra.mxu0 0.0
    %983 = vmatprep.subr.mxu0 0.0
    %984 = vmatpush1.msra.mxu0 0.0
    %985 = vmatprep.subr.mxu0 0.0
    %986 = vmatpush1.msra.mxu0 0.0
    %987 = vmatprep.subr.mxu0 0.0
    %988 = vmatpush1.msra.mxu0 0.0
    %989 = vmatprep.subr.mxu0 0.0
    %990 = vmatpush1.msra.mxu0 0.0
    %991 = vmatprep.subr.mxu0 0.0
    %992 = vmatpush1.msra.mxu0 0.0
    %993 = vmatprep.subr.mxu0 0.0
    %994 = vmatpush1.msra.mxu0 0.0
    %995 = vmatprep.subr.mxu0 0.0
    %996 = vmatpush1.msra.mxu0 0.0
    %997 = vmatprep.subr.mxu0 0.0
    %998 = vmatpush1.msra.mxu0 0.0
    %999 = vmatprep.subr.mxu0 0.0
    %1000 = vmatpush1.msra.mxu0 0.0
    %1001 = vmatprep.subr.mxu0 0.0
    %1002 = vmatpush1.msra.mxu0 0.0
    %1003 = vmatprep.subr.mxu0 0.0
    %1004 = vmatpush1.msra.mxu0 0.0
    %1005 = vmatprep.subr.mxu0 0.0
    %1006 = vmatpush1.msra.mxu0 0.0
    %1007 = vmatprep.subr.mxu0 0.0
    %1008 = vmatpush1.msra.mxu0 0.0
    %1009 = vmatprep.subr.mxu0 0.0
    %1010 = vmatpush1.msra.mxu0 0.0
    %1011 = vmatprep.subr.mxu0 0.0
    %1012 = vmatpush1.msra.mxu0 0.0
    %1013 = vmatprep.subr.mxu0 0.0
    %1014 = vmatpush1.msra.mxu0 0.0
    %1015 = vmatprep.mubr.f32.mxu0 0.0
    %1016 = vmatmul.mubr.f32.gmra.mrb[0].mxu0 %v928
    %v1017 = vpop.f32.mrb[0].mxu0
    %v1018 = vadd.f32 %v925, %v1017
    %v1019 = vpop.f32.mrb[0].mxu0
    %1020 = vmatprep.mubr.f32.mxu0 0.0
    %1021 = vmatmul.mubr.f32.gmra.mrb[0].mxu0 %v931
    %v1022 = vpop.f32.mrb[0].mxu0
    %v1023 = vadd.f32 %v925, %v1022
    %v1024 = vpop.f32.mrb[0].mxu0
    %1025 = vmatprep.mubr.f32.mxu0 0.0
    %1026 = vmatmul.mubr.f32.gmra.mrb[0].mxu0 %v934
    %v1027 = vpop.f32.mrb[0].mxu0
    %v1028 = vadd.f32 %v925, %v1027
    %v1029 = vpop.f32.mrb[0].mxu0
    %1030 = vmatprep.mubr.f32.mxu0 0.0
    %1031 = vmatmul.mubr.f32.gmra.mrb[0].mxu0 %v937
    %v1032 = vpop.f32.mrb[0].mxu0
    %v1033 = vadd.f32 %v925, %v1032
    %v1034 = vpop.f32.mrb[0].mxu0
    %1035 = vmatprep.mubr.f32.mxu0 0.0
    %1036 = vmatmul.mubr.f32.gmra.mrb[0].mxu0 %v940
    %v1037 = vpop.f32.mrb[0].mxu0
    %v1038 = vadd.f32 %v925, %v1037
    %v1039 = vpop.f32.mrb[0].mxu0
    %1040 = vmatprep.mubr.f32.mxu0 0.0
    %1041 = vmatmul.mubr.f32.gmra.mrb[0].mxu0 %v943
    %v1042 = vpop.f32.mrb[0].mxu0
    %v1043 = vadd.f32 %v925, %v1042
    %v1044 = vpop.f32.mrb[0].mxu0
    %1045 = vmatprep.mubr.f32.mxu0 0.0
    %1046 = vmatmul.mubr.f32.gmra.mrb[0].mxu0 %v946
    %v1047 = vpop.f32.mrb[0].mxu0
    %v1048 = vadd.f32 %v925, %v1047
    %v1049 = vpop.f32.mrb[0].mxu0
    %1050 = vmatprep.mubr.f32.mxu0 0.0
    %1051 = vmatmul.mubr.f32.gmra.mrb[0].mxu0 %v949
    %v1052 = vpop.f32.mrb[0].mxu0
    %v1053 = vadd.f32 %v925, %v1052
    %v1054 = vpop.f32.mrb[0].mxu0
    %1055 = vdwg.mxu0
    %vm1056 = vcmask 130048
    %1057 = vst.msk [vmem:[%s7] sm:$0xff] %vm1056, %v1018
    %1058 = vst.msk [vmem:[%s7 + $0x8] sm:$0xff] %vm1056, %v1023
    %1059 = vst.msk [vmem:[%s7 + $0x10] sm:$0xff] %vm1056, %v1028
    %1060 = vst.msk [vmem:[%s7 + $0x18] sm:$0xff] %vm1056, %v1033
    %1061 = vst.msk [vmem:[%s7 + $0x20] sm:$0xff] %vm1056, %v1038
    %1062 = vst.msk [vmem:[%s7 + $0x28] sm:$0xff] %vm1056, %v1043
    %1063 = vst.msk [vmem:[%s7 + $0x30] sm:$0xff] %vm1056, %v1048
    %1064 = vst.msk [vmem:[%s7 + $0x38] sm:$0xff] %vm1056, %v1053
    // Predicated region
    $region38: #{tpu_custom_call.1} parent=1 // pred_check
      _
    $region39: #{tpu_custom_call.1} parent=1 // pred_check_branch
      %1066 = sbr.rel (0) target = $region41
    $region40: #{tpu_custom_call.1} parent=1 // pred_region
      _
    $region41: #{tpu_custom_call.1} parent=1 // pred_fallthru
      _
    // Predicated region
    $region42: #{tpu_custom_call.1} parent=1 // pred_check
      _
    $region43: #{tpu_custom_call.1} parent=1 // pred_check_branch
      %1068 = sbr.rel (0) target = $region45
    $region44: #{tpu_custom_call.1} parent=1 // pred_region
      _
    $region45: #{tpu_custom_call.1} parent=1 // pred_fallthru
      _
    %1069 = vsyncpa [#allocation4], 1
    %1070 = vsyncpa [#allocation6], 1

</llo_original>
